<compile_context>
chip_gen: v6e
topology: v6e:2x2x1
jax: 0.10.0
libtpu: 0.0.40
codegen_flags: <defaults>
</compile_context>

<pallas_src>
import jax
import jax.numpy as jnp
from jax.experimental import pallas as pl
from jax.experimental.pallas import tpu as pltpu

_LANE = 128
_SUBLANE = 8


def _softmax_label_kernel(a_ref, b_ref, w3_ref, bias_ref, out_ref):
    a = a_ref[...]                       # (TB, D)  compute dtype (bf16)
    b = b_ref[...]                       # (TB, D)
    # |a - b| in f32 (v5e VPU has no bf16 ALU), cast back to the MXU dtype.
    diff = jnp.abs(a.astype(jnp.float32) - b.astype(jnp.float32)).astype(a.dtype)

    # Resident weight (3, D, Lp): leading-axis indexing keeps every (D, Lp)
    # slab tile-aligned regardless of D, avoiding in-kernel slice copies.
    w_a = w3_ref[0]
    w_b = w3_ref[1]
    w_d = w3_ref[2]

    # Fold the bias into the accumulator init; three MXU dots accumulate in f32.
    acc = jnp.broadcast_to(bias_ref[...], out_ref.shape).astype(jnp.float32)
    acc = acc + jnp.dot(a, w_a, preferred_element_type=jnp.float32)
    acc = acc + jnp.dot(b, w_b, preferred_element_type=jnp.float32)
    acc = acc + jnp.dot(diff, w_d, preferred_element_type=jnp.float32)
    out_ref[...] = acc.astype(out_ref.dtype)


def prepare_classifier_params(weight, bias, compute_dtype=jnp.bfloat16):
    """One-time preprocessing of the nn.Linear(3D, L) parameters.

    Hoists the transpose out of the per-call path, splits the weight into the
    three per-feature slabs (leading axis), and pads the label dim to a
    multiple of 128 so the resident weight tile and output stores are
    lane-dense.
    """
    L, three_d = weight.shape
    D = three_d // 3
    assert 3 * D == three_d
    lp = pl.cdiv(L, _LANE) * _LANE
    w3 = jnp.zeros((3, D, lp), compute_dtype)
    w3 = w3.at[:, :, :L].set(weight.T.reshape(3, D, L).astype(compute_dtype))
    bias_p = jnp.zeros((1, lp), jnp.float32)
    bias_p = bias_p.at[:, :L].set(bias.astype(jnp.float32))
    return w3, bias_p, L


def _pick_batch_tile(batch, dim, lp, in_itemsize,
                     budget_bytes=24 * 1024 * 1024, cap=1024):
    # Resident weight + bias (counted double-buffered to be conservative).
    resident = 2 * (3 * dim * lp * in_itemsize + lp * 4)
    avail = max(budget_bytes - resident, 1 << 20)
    # Per batch row (double-buffered pipeline):
    #   2 rep inputs x 2 buffers x D x itemsize  +  2 output buffers x Lp x 4B
    per_row = 4 * dim * in_itemsize + 2 * lp * 4
    # Packed-sublane granularity (16 rows for bf16, 8 for f32).
    sub = _SUBLANE * max(1, 4 // in_itemsize)
    tb = max(sub, min(cap, avail // per_row))
    tb = (tb // sub) * sub
    b_rounded = pl.cdiv(batch, sub) * sub
    return min(tb, b_rounded)


def softmax_label_forward(rep_a, rep_b, w3_padded, bias_padded, num_labels,
                          compute_dtype=jnp.bfloat16):
    """Forward pass of Softmax_label.

    Args:
      rep_a, rep_b: (B, D) sentence embeddings.
      w3_padded:    (3, D, Lp) pre-transposed, lane-padded classifier weight.
      bias_padded:  (1, Lp)    lane-padded classifier bias (f32).
      num_labels:   L, the true number of labels (<= Lp).
    Returns:
      (reps, logits) matching the PyTorch module: ([rep_a, rep_b], (B, L) f32).
    """
    B, D = rep_a.shape
    three, d_w, lp = w3_padded.shape
    assert three == 3 and d_w == D

    in_itemsize = jnp.dtype(compute_dtype).itemsize
    a = rep_a.astype(compute_dtype)
    b = rep_b.astype(compute_dtype)

    tb = _pick_batch_tile(B, D, lp, in_itemsize)
    bp = pl.cdiv(B, tb) * tb
    if bp != B:
        pad = bp - B
        a = jnp.pad(a, ((0, pad), (0, 0)))
        b = jnp.pad(b, ((0, pad), (0, 0)))

    cost = pl.CostEstimate(
        flops=2 * bp * 3 * D * lp + 4 * bp * D,
        transcendentals=0,
        bytes_accessed=(2 * bp * D * in_itemsize          # rep reads
                        + 3 * D * lp * in_itemsize        # resident weight
                        + lp * 4                          # bias
                        + bp * lp * 4),                   # logits write
    )

    logits_padded = pl.pallas_call(
        _softmax_label_kernel,
        out_shape=jax.ShapeDtypeStruct((bp, lp), jnp.float32),
        grid=(bp // tb,),
        in_specs=[
            pl.BlockSpec((tb, D), lambda i: (i, 0)),            # rep_a tiles
            pl.BlockSpec((tb, D), lambda i: (i, 0)),            # rep_b tiles
            pl.BlockSpec((3, D, lp), lambda i: (0, 0, 0)),      # weight, resident
            pl.BlockSpec((1, lp), lambda i: (0, 0)),            # bias, resident
        ],
        out_specs=pl.BlockSpec((tb, lp), lambda i: (i, 0)),
        compiler_params=pltpu.CompilerParams(
            dimension_semantics=("parallel",),                  # 2x on v7x megacore
            vmem_limit_bytes=32 * 1024 * 1024,
        ),
        cost_estimate=cost,
    )(a, b, w3_padded, bias_padded)

    logits = logits_padded[:B, :num_labels]
    return [rep_a, rep_b], logits


def _ref_forward_matched(rep_a, rep_b, weight, bias, compute_dtype=jnp.bfloat16):
    # Matches the kernel's precision path: bf16 inputs/weights, f32 diff, f32 acc.
    a = rep_a.astype(compute_dtype)
    b = rep_b.astype(compute_dtype)
    diff = jnp.abs(a.astype(jnp.float32) - b.astype(jnp.float32)).astype(compute_dtype)
    feats = jnp.concatenate([a, b, diff], axis=1)
    return jnp.dot(feats, weight.T.astype(compute_dtype),
                   preferred_element_type=jnp.float32) + bias.astype(jnp.float32)


def _ref_forward_f32(rep_a, rep_b, weight, bias):
    feats = jnp.concatenate([rep_a, rep_b, jnp.abs(rep_a - rep_b)], axis=1)
    return feats @ weight.T + bias


if __name__ == "__main__":
    # Small shapes consistent with the module: batch=8, embedding dim=32, 4 labels.
    B, D, L = 8, 32, 4

    key = jax.random.PRNGKey(0)
    k_a, k_b, k_w, k_bias = jax.random.split(key, 4)

    rep_a = jax.random.normal(k_a, (B, D), dtype=jnp.float32)
    rep_b = jax.random.normal(k_b, (B, D), dtype=jnp.float32)

    # Deterministic nn.Linear(3*D, L)-style init: U(-1/sqrt(fan_in), 1/sqrt(fan_in)).
    fan_in = 3 * D
    bound = 1.0 / (fan_in ** 0.5)
    weight = jax.random.uniform(k_w, (L, 3 * D), jnp.float32, -bound, bound)
    bias = jax.random.uniform(k_bias, (L,), jnp.float32, -bound, bound)

    # TODO(synk): the SentenceTransformer encoder (`self.model`) is not part of
    # this module's math; embeddings are taken as precomputed inputs.
    # One-time parameter prep (transpose + split + lane-pad), hoisted out of forward.
    w3_padded, bias_padded, num_labels = prepare_classifier_params(weight, bias)

    reps, logits = softmax_label_forward(rep_a, rep_b, w3_padded, bias_padded,
                                         num_labels)
    logits = jax.block_until_ready(logits)

    expected_bf16 = _ref_forward_matched(rep_a, rep_b, weight, bias)
    expected_f32 = _ref_forward_f32(rep_a, rep_b, weight, bias)

    assert logits.shape == (B, L)
    # Tight check against a precision-matched (bf16 MXU, f32 acc) reference.
    assert jnp.allclose(logits, expected_bf16, atol=1e-3, rtol=1e-3)
    # Loose semantic check against the full-f32 PyTorch-equivalent math.
    assert jnp.allclose(logits, expected_f32, atol=5e-2, rtol=5e-2)

    print("KERNEL_OK")
</pallas_src>

<mosaic_0001>
module attributes {stable_mosaic.version = 11 : i64} {
  func.func @_softmax_label_kernel(%arg0: i32, %arg1: memref<16x32xbf16, #tpu.memory_space<vmem>>, %arg2: memref<16x32xbf16, #tpu.memory_space<vmem>>, %arg3: memref<3x32x128xbf16, #tpu.memory_space<vmem>>, %arg4: memref<1x128xf32, #tpu.memory_space<vmem>>, %arg5: memref<16x128xf32, #tpu.memory_space<vmem>>) attributes {dimension_semantics = [#tpu.dimension_semantics<parallel>], iteration_bounds = array<i64: 1>, scalar_prefetch = 0 : i64, scratch_operands = 0 : i64, tpu.core_type = #tpu.core_type<tc>, window_params = [{transform_indices = @transform_0, window_bounds = array<i64: 16, 32>}, {transform_indices = @transform_1, window_bounds = array<i64: 16, 32>}, {pipeline_mode = #tpu.pipeline_mode<synchronous>, transform_indices = @transform_2, window_bounds = array<i64: 3, 32, 128>}, {pipeline_mode = #tpu.pipeline_mode<synchronous>, transform_indices = @transform_3, window_bounds = array<i64: 1, 128>}, {transform_indices = @transform_4, window_bounds = array<i64: 16, 128>}]} {
    %c0 = arith.constant 0 : index
    %c0_0 = arith.constant 0 : index
    %0 = vector.load %arg1[%c0, %c0_0] : memref<16x32xbf16, #tpu.memory_space<vmem>>, vector<16x32xbf16>
    %c0_1 = arith.constant 0 : index
    %c0_2 = arith.constant 0 : index
    %1 = vector.load %arg2[%c0_1, %c0_2] : memref<16x32xbf16, #tpu.memory_space<vmem>>, vector<16x32xbf16>
    %2 = arith.extf %0 : vector<16x32xbf16> to vector<16x32xf32>
    %3 = arith.extf %1 : vector<16x32xbf16> to vector<16x32xf32>
    %4 = arith.subf %2, %3 : vector<16x32xf32>
    %5 = math.absf %4 : vector<16x32xf32>
    %6 = arith.truncf %5 : vector<16x32xf32> to vector<16x32xbf16>
    %c0_3 = arith.constant 0 : index
    %c0_4 = arith.constant 0 : index
    %c0_5 = arith.constant 0 : index
    %7 = vector.load %arg3[%c0_3, %c0_4, %c0_5] : memref<3x32x128xbf16, #tpu.memory_space<vmem>>, vector<1x32x128xbf16>
    %8 = vector.shape_cast %7 : vector<1x32x128xbf16> to vector<32x128xbf16>
    %c1 = arith.constant 1 : index
    %c0_6 = arith.constant 0 : index
    %c0_7 = arith.constant 0 : index
    %9 = vector.load %arg3[%c1, %c0_6, %c0_7] : memref<3x32x128xbf16, #tpu.memory_space<vmem>>, vector<1x32x128xbf16>
    %10 = vector.shape_cast %9 : vector<1x32x128xbf16> to vector<32x128xbf16>
    %c2 = arith.constant 2 : index
    %c0_8 = arith.constant 0 : index
    %c0_9 = arith.constant 0 : index
    %11 = vector.load %arg3[%c2, %c0_8, %c0_9] : memref<3x32x128xbf16, #tpu.memory_space<vmem>>, vector<1x32x128xbf16>
    %12 = vector.shape_cast %11 : vector<1x32x128xbf16> to vector<32x128xbf16>
    %c0_10 = arith.constant 0 : index
    %c0_11 = arith.constant 0 : index
    %13 = vector.load %arg4[%c0_10, %c0_11] : memref<1x128xf32, #tpu.memory_space<vmem>>, vector<1x128xf32>
    %14 = vector.shape_cast %13 : vector<1x128xf32> to vector<1x128xf32>
    %15 = vector.broadcast %14 : vector<1x128xf32> to vector<16x128xf32>
    %cst = arith.constant dense<0.000000e+00> : vector<16x128xf32>
    %16 = tpu.matmul %0, %8, %cst {dimension_numbers = #tpu.dot_dimension_numbers<[1], [0], [0], [1], [0, 0, 1, 1], [], []>} : vector<16x32xbf16>, vector<32x128xbf16>, vector<16x128xf32> -> vector<16x128xf32>
    %17 = arith.addf %15, %16 : vector<16x128xf32>
    %cst_12 = arith.constant dense<0.000000e+00> : vector<16x128xf32>
    %18 = tpu.matmul %1, %10, %cst_12 {dimension_numbers = #tpu.dot_dimension_numbers<[1], [0], [0], [1], [0, 0, 1, 1], [], []>} : vector<16x32xbf16>, vector<32x128xbf16>, vector<16x128xf32> -> vector<16x128xf32>
    %19 = arith.addf %17, %18 : vector<16x128xf32>
    %cst_13 = arith.constant dense<0.000000e+00> : vector<16x128xf32>
    %20 = tpu.matmul %6, %12, %cst_13 {dimension_numbers = #tpu.dot_dimension_numbers<[1], [0], [0], [1], [0, 0, 1, 1], [], []>} : vector<16x32xbf16>, vector<32x128xbf16>, vector<16x128xf32> -> vector<16x128xf32>
    %21 = arith.addf %19, %20 : vector<16x128xf32>
    %c0_14 = arith.constant 0 : index
    %c0_15 = arith.constant 0 : index
    %22 = vector.load %arg5[%c0_14, %c0_15] : memref<16x128xf32, #tpu.memory_space<vmem>>, vector<16x128xf32>
    tpu.vector_store %arg5[%c0_14, %c0_15], %21 {strides = array<i32>} : memref<16x128xf32, #tpu.memory_space<vmem>>, vector<16x128xf32>,
    return
  }
  func.func @transform_0(%arg0: i32) -> (i32, i32) {
    %c0_i32 = arith.constant 0 : i32
    %c0_i32_0 = arith.constant 0 : i32
    return %arg0, %c0_i32 : i32, i32
  }
  func.func @transform_1(%arg0: i32) -> (i32, i32) {
    %c0_i32 = arith.constant 0 : i32
    %c0_i32_0 = arith.constant 0 : i32
    return %arg0, %c0_i32 : i32, i32
  }
  func.func @transform_2(%arg0: i32) -> (i32, i32, i32) {
    %c0_i32 = arith.constant 0 : i32
    %c0_i32_0 = arith.constant 0 : i32
    %c0_i32_1 = arith.constant 0 : i32
    %c0_i32_2 = arith.constant 0 : i32
    return %c0_i32, %c0_i32_0, %c0_i32_1 : i32, i32, i32
  }
  func.func @transform_3(%arg0: i32) -> (i32, i32) {
    %c0_i32 = arith.constant 0 : i32
    %c0_i32_0 = arith.constant 0 : i32
    %c0_i32_1 = arith.constant 0 : i32
    return %c0_i32, %c0_i32_0 : i32, i32
  }
  func.func @transform_4(%arg0: i32) -> (i32, i32) {
    %c0_i32 = arith.constant 0 : i32
    %c0_i32_0 = arith.constant 0 : i32
    return %arg0, %c0_i32 : i32, i32
  }
}

</mosaic_0001>

<llo_original>
// kernel: tpu_custom_call.1
$region0: #{tpu_custom_call.1}
  #allocation0 [shape = 'u32[]', space=smem, size = 0x4, offset = 0x4, fixed_abs, tag = 'smem constant byte address 0x4 - core index']
  #allocation1 [shape = 'u32[144,128]{1,0:T(1,128)}', space=vmem, size = 0x12000, scoped, tag = 'internal scratch']
  %s0 = inlined_call_operand.hbm [shape: bf16[16,32], index: 0, kind: input, shape index: {}]
  %s1 = inlined_call_operand.hbm [shape: bf16[16,32], index: 1, kind: input, shape index: {}]
  %s2 = inlined_call_operand.hbm [shape: bf16[3,32,128], index: 2, kind: input, shape index: {}]
  %s3 = inlined_call_operand.vmem [shape: f32[1,128], index: 3, kind: input, shape index: {}]
  %s4 = inlined_call_operand.hbm [shape: f32[16,128], index: 4, kind: output, shape index: {}]
  %s5 = sld [smem:[#allocation0]]
  $region38: #{tpu_custom_call.1} parent=0
    _
  %s7 = ssub.s32 1, %s5
  %s8 = scalar_select 0, %s7, %s5
  $region1: #{tpu_custom_call.1} parent=0
    #allocation2 [shape = 'u8[4096]{0}', space=vmem, size = 0x1000, scoped, tag = 'input window, operand 0, single buffered']
    #allocation3 [shape = 's32[1]{0}', space=sflag, size = 0x4, scoped, tag = 'scoped memory for tpu_custom_call.1']
    #allocation4 [shape = 's32[1]{0}', space=sflag, size = 0x4, scoped, tag = 'scoped memory for tpu_custom_call.1']
    #allocation5 [shape = 'u8[4096]{0}', space=vmem, size = 0x1000, scoped, tag = 'input window, operand 1, single buffered']
    #allocation6 [shape = 's32[1]{0}', space=sflag, size = 0x4, scoped, tag = 'scoped memory for tpu_custom_call.1']
    #allocation7 [shape = 'u8[24576]{0}', space=vmem, size = 0x6000, scoped, tag = 'input window, operand 2, single buffered']
    #allocation8 [shape = 'u8[8192]{0}', space=vmem, size = 0x2000, scoped, tag = 'output window, operand 0, single buffered']
    %9 = vsyncpa [#allocation3], 0
    %10 = vsyncpa [#allocation6], 0
    %11 = vsyncpa [#allocation4], 0
    // Predicated region
    $region2: #{tpu_custom_call.1} parent=1 // pred_check
      _
    $region3: #{tpu_custom_call.1} parent=1 // pred_check_branch
      %13 = sbr.rel (0) target = $region5
    $region4: #{tpu_custom_call.1} parent=1 // pred_region
      %s15 = ssub.s32 128, 128
      %16 = vsyncadd [#allocation3], %s15
      %s17 = sshll.u32 [#allocation2], 4
      %s18 = int_to_ptr.vmem [resolvable:$true] %s17
      %23 = dma.hbm_to_vmem [thread:$0]  %s0, 128, %s18, [#allocation3], 64, 64, 4
    $region5: #{tpu_custom_call.1} parent=1 // pred_fallthru
      _
    // Predicated region
    $region6: #{tpu_custom_call.1} parent=1 // pred_check
      _
    $region7: #{tpu_custom_call.1} parent=1 // pred_check_branch
      %25 = sbr.rel (0) target = $region9
    $region8: #{tpu_custom_call.1} parent=1 // pred_region
      %s27 = ssub.s32 128, 128
      %28 = vsyncadd [#allocation6], %s27
      %s29 = sshll.u32 [#allocation5], 4
      %s30 = int_to_ptr.vmem [resolvable:$true] %s29
      %35 = dma.hbm_to_vmem [thread:$0]  %s1, 128, %s30, [#allocation6], 64, 64, 4
    $region9: #{tpu_custom_call.1} parent=1 // pred_fallthru
      _
    // Predicated region
    $region10: #{tpu_custom_call.1} parent=1 // pred_check
      _
    $region11: #{tpu_custom_call.1} parent=1 // pred_check_branch
      %37 = sbr.rel (0) target = $region13
    $region12: #{tpu_custom_call.1} parent=1 // pred_region
      %s39 = ssub.s32 768, 768
      %40 = vsyncadd [#allocation6], %s39
      %s41 = sshll.u32 [#allocation7], 4
      %s42 = int_to_ptr.vmem [resolvable:$true] %s41
      %47 = dma.hbm_to_vmem [thread:$0]  %s2, 768, %s42, [#allocation6], 64, 64, 4
    $region13: #{tpu_custom_call.1} parent=1 // pred_fallthru
      _
    // Predicated region
    $region14: #{tpu_custom_call.1} parent=1 // pred_check
      _
    $region15: #{tpu_custom_call.1} parent=1 // pred_check_branch
      %49 = sbr.rel (0) target = $region17
    $region16: #{tpu_custom_call.1} parent=1 // pred_region
      _
    $region17: #{tpu_custom_call.1} parent=1 // pred_fallthru
      _
    // Predicated region
    $region18: #{tpu_custom_call.1} parent=1 // pred_check
      _
    $region19: #{tpu_custom_call.1} parent=1 // pred_check_branch
      %51 = sbr.rel (0) target = $region21
    $region20: #{tpu_custom_call.1} parent=1 // pred_region
      %52 = dma.done [#allocation3], 128
    $region21: #{tpu_custom_call.1} parent=1 // pred_fallthru
      _
    // Predicated region
    $region22: #{tpu_custom_call.1} parent=1 // pred_check
      _
    $region23: #{tpu_custom_call.1} parent=1 // pred_check_branch
      %54 = sbr.rel (0) target = $region25
    $region24: #{tpu_custom_call.1} parent=1 // pred_region
      %55 = dma.done [#allocation6], 128
    $region25: #{tpu_custom_call.1} parent=1 // pred_fallthru
      _
    // Predicated region
    $region26: #{tpu_custom_call.1} parent=1 // pred_check
      _
    $region27: #{tpu_custom_call.1} parent=1 // pred_check_branch
      %57 = sbr.rel (0) target = $region29
    $region28: #{tpu_custom_call.1} parent=1 // pred_region
      %58 = dma.done [#allocation6], 768
    $region29: #{tpu_custom_call.1} parent=1 // pred_fallthru
      _
    %v60 = vld [vmem:[#allocation2] sm:$0xf]
    %v61 = vld [vmem:[#allocation2 + $0x4] sm:$0xf]
    %v62 = vld [vmem:[#allocation5] sm:$0xf]
    %v63 = vld [vmem:[#allocation5 + $0x4] sm:$0xf]
    %v64 = vunpack.c.l.bf16 %v60
    %v65 = vunpack.c.l.bf16 %v61
    %v66 = vunpack.c.l.bf16 %v62
    %v67 = vunpack.c.l.bf16 %v63
    %v68 = vsub.f32 %v64, %v66
    %v69 = vsub.f32 %v65, %v67
    %v70 = vand.u32 2147483647, %v68
    %v71 = vand.u32 2147483647, %v69
    %v72 = vpack.c.bf16 %v71, %v70
    %v73 = vld [vmem:[#allocation7] sm:$0xf]
    %v74 = vld [vmem:[#allocation7 + $0x4] sm:$0xf]
    %v75 = vld [vmem:[#allocation7 + $0x8] sm:$0xf]
    %v76 = vld [vmem:[#allocation7 + $0xc] sm:$0xf]
    %s77 = scalar_lea.vmem [#allocation7], 16
    %v78 = vld [vmem:[%s77] sm:$0xf]
    %v79 = vld [vmem:[%s77 + $0x4] sm:$0xf]
    %v80 = vld [vmem:[%s77 + $0x8] sm:$0xf]
    %v81 = vld [vmem:[%s77 + $0xc] sm:$0xf]
    %s82 = scalar_lea.vmem [#allocation7], 32
    %v83 = vld [vmem:[%s82] sm:$0xf]
    %v84 = vld [vmem:[%s82 + $0x4] sm:$0xf]
    %v85 = vld [vmem:[%s82 + $0x8] sm:$0xf]
    %v86 = vld [vmem:[%s82 + $0xc] sm:$0xf]
    %v87 = vld [vmem:[%s3] sm:$0x1]
    %v89 = vlaneseq
    %v90 = vshrl.u32 %v89, 7
    %v91 = vsub.s32 0, %v90
    %v92 = vrot.slane %v87, %v91
    %v96 = vunpack.c.l.b16 %v60
    %v97 = vunpack.c.l.b16 %v61
    %v98 = vpack.c.b16 %v97, %v96
    %v103 = vunpack.c.l.b16 %v73
    %v104 = vunpack.c.l.b16 %v74
    %v105 = vunpack.c.l.b16 %v75
    %v106 = vunpack.c.l.b16 %v76
    %v107 = vpack.c.b16 %v104, %v103
    %v108 = vpack.c.b16 %v106, %v105
    %vm111 = vcmask 261120
    %v113 = vsel %vm111, %v98, 0
    %115 = vmatprep.subr.bf16.mxu0 0
    %116 = vmatpush1.bf16.msra.mxu0 0
    %117 = vmatprep.subr.bf16.mxu0 0
    %118 = vmatpush1.bf16.msra.mxu0 0
    %119 = vmatprep.subr.bf16.mxu0 0
    %120 = vmatpush1.bf16.msra.mxu0 0
    %121 = vmatprep.subr.bf16.mxu0 0
    %122 = vmatpush1.bf16.msra.mxu0 0
    %123 = vmatprep.subr.bf16.mxu0 0
    %124 = vmatpush1.bf16.msra.mxu0 0
    %125 = vmatprep.subr.bf16.mxu0 0
    %126 = vmatpush1.bf16.msra.mxu0 0
    %127 = vmatprep.subr.bf16.mxu0 0
    %128 = vmatpush1.bf16.msra.mxu0 %v108
    %129 = vmatprep.subr.bf16.mxu0 0
    %130 = vmatpush1.bf16.msra.mxu0 %v107
    %131 = vmatprep.subr.bf16.mxu0 0
    %132 = vmatpush2.bf16.msra.mxu0 0
    %133 = vmatprep.subr.bf16.mxu0 0
    %134 = vmatpush2.bf16.msra.mxu0 0
    %135 = vmatprep.subr.bf16.mxu0 0
    %136 = vmatpush2.bf16.msra.mxu0 0
    %137 = vmatprep.subr.bf16.mxu0 0
    %138 = vmatpush2.bf16.msra.mxu0 0
    %139 = vmatprep.subr.bf16.mxu0 0
    %140 = vmatpush2.bf16.msra.mxu0 0
    %141 = vmatprep.subr.bf16.mxu0 0
    %142 = vmatpush2.bf16.msra.mxu0 0
    %143 = vmatprep.subr.bf16.mxu0 0
    %144 = vmatpush2.bf16.msra.mxu0 0
    %145 = vmatprep.subr.bf16.mxu0 0
    %146 = vmatpush2.bf16.msra.mxu0 0
    %147 = vmatprep.mubr.bf16.mxu0 0
    %148 = vmatmul.mubr.bf16.gmra.mxu0 %v113
    %v149 = vpop.f32.mrf.mxu0
    %v150 = vadd.f32 0.0, %v149
    %v151 = vpop.f32.mrf.mxu0
    %v152 = vpop.f32.mrf.mxu0
    %v153 = vadd.f32 0.0, %v152
    %v154 = vpop.f32.mrf.mxu0
    %155 = vdwg.mxu0
    %v156 = vadd.f32 %v92, %v150
    %v157 = vadd.f32 %v92, %v153
    %v160 = vunpack.c.l.b16 %v62
    %v161 = vunpack.c.l.b16 %v63
    %v162 = vpack.c.b16 %v161, %v160
    %v167 = vunpack.c.l.b16 %v78
    %v168 = vunpack.c.l.b16 %v79
    %v169 = vunpack.c.l.b16 %v80
    %v170 = vunpack.c.l.b16 %v81
    %v171 = vpack.c.b16 %v168, %v167
    %v172 = vpack.c.b16 %v170, %v169
    %v176 = vsel %vm111, %v162, 0
    %178 = vmatprep.subr.bf16.mxu0 0
    %179 = vmatpush1.bf16.msra.mxu0 0
    %180 = vmatprep.subr.bf16.mxu0 0
    %181 = vmatpush1.bf16.msra.mxu0 0
    %182 = vmatprep.subr.bf16.mxu0 0
    %183 = vmatpush1.bf16.msra.mxu0 0
    %184 = vmatprep.subr.bf16.mxu0 0
    %185 = vmatpush1.bf16.msra.mxu0 0
    %186 = vmatprep.subr.bf16.mxu0 0
    %187 = vmatpush1.bf16.msra.mxu0 0
    %188 = vmatprep.subr.bf16.mxu0 0
    %189 = vmatpush1.bf16.msra.mxu0 0
    %190 = vmatprep.subr.bf16.mxu0 0
    %191 = vmatpush1.bf16.msra.mxu0 %v172
    %192 = vmatprep.subr.bf16.mxu0 0
    %193 = vmatpush1.bf16.msra.mxu0 %v171
    %194 = vmatprep.subr.bf16.mxu0 0
    %195 = vmatpush2.bf16.msra.mxu0 0
    %196 = vmatprep.subr.bf16.mxu0 0
    %197 = vmatpush2.bf16.msra.mxu0 0
    %198 = vmatprep.subr.bf16.mxu0 0
    %199 = vmatpush2.bf16.msra.mxu0 0
    %200 = vmatprep.subr.bf16.mxu0 0
    %201 = vmatpush2.bf16.msra.mxu0 0
    %202 = vmatprep.subr.bf16.mxu0 0
    %203 = vmatpush2.bf16.msra.mxu0 0
    %204 = vmatprep.subr.bf16.mxu0 0
    %205 = vmatpush2.bf16.msra.mxu0 0
    %206 = vmatprep.subr.bf16.mxu0 0
    %207 = vmatpush2.bf16.msra.mxu0 0
    %208 = vmatprep.subr.bf16.mxu0 0
    %209 = vmatpush2.bf16.msra.mxu0 0
    %210 = vmatprep.mubr.bf16.mxu0 0
    %211 = vmatmul.mubr.bf16.gmra.mxu0 %v176
    %v212 = vpop.f32.mrf.mxu0
    %v213 = vadd.f32 0.0, %v212
    %v214 = vpop.f32.mrf.mxu0
    %v215 = vpop.f32.mrf.mxu0
    %v216 = vadd.f32 0.0, %v215
    %v217 = vpop.f32.mrf.mxu0
    %218 = vdwg.mxu0
    %v219 = vadd.f32 %v156, %v213
    %v220 = vadd.f32 %v157, %v216
    %v225 = vunpack.c.l.b16 %v83
    %v226 = vunpack.c.l.b16 %v84
    %v227 = vunpack.c.l.b16 %v85
    %v228 = vunpack.c.l.b16 %v86
    %v229 = vpack.c.b16 %v226, %v225
    %v230 = vpack.c.b16 %v228, %v227
    %v234 = vsel %vm111, %v72, 0
    %236 = vmatprep.subr.bf16.mxu0 0
    %237 = vmatpush1.bf16.msra.mxu0 0
    %238 = vmatprep.subr.bf16.mxu0 0
    %239 = vmatpush1.bf16.msra.mxu0 0
    %240 = vmatprep.subr.bf16.mxu0 0
    %241 = vmatpush1.bf16.msra.mxu0 0
    %242 = vmatprep.subr.bf16.mxu0 0
    %243 = vmatpush1.bf16.msra.mxu0 0
    %244 = vmatprep.subr.bf16.mxu0 0
    %245 = vmatpush1.bf16.msra.mxu0 0
    %246 = vmatprep.subr.bf16.mxu0 0
    %247 = vmatpush1.bf16.msra.mxu0 0
    %248 = vmatprep.subr.bf16.mxu0 0
    %249 = vmatpush1.bf16.msra.mxu0 %v230
    %250 = vmatprep.subr.bf16.mxu0 0
    %251 = vmatpush1.bf16.msra.mxu0 %v229
    %252 = vmatprep.subr.bf16.mxu0 0
    %253 = vmatpush2.bf16.msra.mxu0 0
    %254 = vmatprep.subr.bf16.mxu0 0
    %255 = vmatpush2.bf16.msra.mxu0 0
    %256 = vmatprep.subr.bf16.mxu0 0
    %257 = vmatpush2.bf16.msra.mxu0 0
    %258 = vmatprep.subr.bf16.mxu0 0
    %259 = vmatpush2.bf16.msra.mxu0 0
    %260 = vmatprep.subr.bf16.mxu0 0
    %261 = vmatpush2.bf16.msra.mxu0 0
    %262 = vmatprep.subr.bf16.mxu0 0
    %263 = vmatpush2.bf16.msra.mxu0 0
    %264 = vmatprep.subr.bf16.mxu0 0
    %265 = vmatpush2.bf16.msra.mxu0 0
    %266 = vmatprep.subr.bf16.mxu0 0
    %267 = vmatpush2.bf16.msra.mxu0 0
    %268 = vmatprep.mubr.bf16.mxu0 0
    %269 = vmatmul.mubr.bf16.gmra.mxu0 %v234
    %v270 = vpop.f32.mrf.mxu0
    %v271 = vadd.f32 0.0, %v270
    %v272 = vpop.f32.mrf.mxu0
    %v273 = vpop.f32.mrf.mxu0
    %v274 = vadd.f32 0.0, %v273
    %v275 = vpop.f32.mrf.mxu0
    %276 = vdwg.mxu0
    %v277 = vadd.f32 %v219, %v271
    %v278 = vadd.f32 %v220, %v274
    %279 = vst [vmem:[#allocation8] sm:$0xff] %v277
    %280 = vst [vmem:[#allocation8 + $0x8] sm:$0xff] %v278
    // Predicated region
    $region30: #{tpu_custom_call.1} parent=1 // pred_check
      _
    $region31: #{tpu_custom_call.1} parent=1 // pred_check_branch
      %282 = sbr.rel (0) target = $region33
    $region32: #{tpu_custom_call.1} parent=1 // pred_region
      %s284 = ssub.s32 256, 256
      %285 = vsyncadd [#allocation4], %s284
      %s286 = sshll.u32 [#allocation8], 4
      %s287 = int_to_ptr.vmem [resolvable:$true] %s286
      %292 = dma.vmem_to_hbm [thread:$0]  %s287, 256, %s4, [#allocation4], 128, 128, 8
    $region33: #{tpu_custom_call.1} parent=1 // pred_fallthru
      _
    // Predicated region
    $region34: #{tpu_custom_call.1} parent=1 // pred_check
      _
    $region35: #{tpu_custom_call.1} parent=1 // pred_check_branch
      %294 = sbr.rel (0) target = $region37
    $region36: #{tpu_custom_call.1} parent=1 // pred_region
      %295 = dma.done [#allocation4], 256
    $region37: #{tpu_custom_call.1} parent=1 // pred_fallthru
      _
    %296 = vsyncpa [#allocation3], 1
    %297 = vsyncpa [#allocation6], 1
    %298 = vsyncpa [#allocation4], 1

</llo_original>
